<compile_context>
chip_gen: v7x
topology: tpu7x:2x2x1
jax: 0.10.0
libtpu: 0.0.40
codegen_flags: <defaults>
</compile_context>

<pallas_src>
import functools

import jax
import jax.numpy as jnp
from jax.experimental import pallas as pl
from jax.experimental.pallas import tpu as pltpu

_LANE = 128
_DEFAULT_BLOCK_BYTES = 4 * 1024 * 1024     # per-block x bytes (v7x-friendly)
_VMEM_LIMIT_BYTES = 32 * 1024 * 1024       # < 64 MiB physical on v7x


# ---------------------------------------------------------------------------
# Kernel bodies
# ---------------------------------------------------------------------------
def _excitation(mean_col, w1_ref, b1_ref, w2_ref, b2_ref):
    """Column-form SE MLP: (C,1) mean -> (C,1) sigmoid gate (f32)."""
    h = jnp.dot(w1_ref[...], mean_col, preferred_element_type=jnp.float32)
    h = jnp.maximum(h + b1_ref[...], 0.0)                       # (H, 1)
    g = jnp.dot(w2_ref[...], h, preferred_element_type=jnp.float32)
    return jax.nn.sigmoid(g + b2_ref[...])                      # (C, 1)


def _se_fused_kernel(x_ref, w1_ref, b1_ref, w2_ref, b2_ref, o_ref, *, inv_t):
    """One batch row per grid step: mean -> MLP -> scale, all in VMEM."""
    xb = x_ref[0]                                                # (C, T), native dtype
    # f32 accumulation for the time-sum only (no full f32 copy of x).
    s = jnp.sum(xb, axis=-1, keepdims=True, dtype=jnp.float32)   # (C, 1)
    g = _excitation(s * inv_t, w1_ref, b1_ref, w2_ref, b2_ref)   # (C, 1) f32
    o_ref[...] = (xb * g.astype(o_ref.dtype))[None]              # (1, C, T)


def _se_squeeze_excite_kernel(x_ref, w1_ref, b1_ref, w2_ref, b2_ref,
                              gate_ref, acc_ref, *, inv_t):
    """Pass 1: accumulate time-sum over T tiles; gate at the last tile."""
    t = pl.program_id(1)

    @pl.when(t == 0)
    def _():
        acc_ref[...] = jnp.zeros_like(acc_ref)

    acc_ref[...] += jnp.sum(x_ref[0], axis=-1, keepdims=True,
                            dtype=jnp.float32)                   # (C, 1)

    @pl.when(t == pl.num_programs(1) - 1)
    def _():
        g = _excitation(acc_ref[...] * inv_t,
                        w1_ref, b1_ref, w2_ref, b2_ref)          # (C, 1) f32
        gate_ref[...] = g[None]                                  # (1, C, 1)


def _se_scale_kernel(x_ref, gate_ref, o_ref):
    """Pass 2: out tile = x tile * per-(b,c) gate (broadcast over T)."""
    o_ref[...] = x_ref[...] * gate_ref[...].astype(o_ref.dtype)


# ---------------------------------------------------------------------------
# Wrapper
# ---------------------------------------------------------------------------
def se_connect(x, w1, b1, w2, b2, *, max_block_bytes=_DEFAULT_BLOCK_BYTES):
    """x: (B, C, T); w1: (C//s, C); b1: (C//s,); w2: (C, C//s); b2: (C,)."""
    B, C, T = x.shape
    H = w1.shape[0]
    itemsize = jnp.dtype(x.dtype).itemsize
    inv_t = 1.0 / float(T)

    # Small glue: column-vector biases, f32 weights (gate math is f32).
    w1f = w1.astype(jnp.float32)
    w2f = w2.astype(jnp.float32)
    b1c = b1.reshape(H, 1).astype(jnp.float32)
    b2c = b2.reshape(C, 1).astype(jnp.float32)

    weight_specs = [
        pl.BlockSpec((H, C), lambda *idx: (0, 0)),   # w1 (resident across grid)
        pl.BlockSpec((H, 1), lambda *idx: (0, 0)),   # b1
        pl.BlockSpec((C, H), lambda *idx: (0, 0)),   # w2
        pl.BlockSpec((C, 1), lambda *idx: (0, 0)),   # b2
    ]
    params_bytes = (H * C + C * H + H + C) * 4

    slab_bytes = C * T * itemsize
    if slab_bytes <= max_block_bytes:
        # ---- Fused single-pass path: grid over B, block (1, C, T). ----------
        return pl.pallas_call(
            functools.partial(_se_fused_kernel, inv_t=inv_t),
            out_shape=jax.ShapeDtypeStruct((B, C, T), x.dtype),
            grid=(B,),
            in_specs=[pl.BlockSpec((1, C, T), lambda b: (b, 0, 0))] + weight_specs,
            out_specs=pl.BlockSpec((1, C, T), lambda b: (b, 0, 0)),
            compiler_params=pltpu.CompilerParams(
                dimension_semantics=("parallel",),
                vmem_limit_bytes=_VMEM_LIMIT_BYTES),
            cost_estimate=pl.CostEstimate(
                flops=int(B * (2 * C * T + 4 * C * H)),
                transcendentals=int(B * C),
                bytes_accessed=int(2 * B * C * T * itemsize + params_bytes)),
        )(x, w1f, b1c, w2f, b2c)

    # ---- Two-pass path (long T): lane-dense 128-multiple T tiles. -----------
    tile_t = max(_LANE, (max_block_bytes // (C * itemsize)) // _LANE * _LANE)
    t_pad = pl.cdiv(T, tile_t) * tile_t
    n_t = t_pad // tile_t
    # Zero-pad T in the wrapper (padding contributes 0 to the sum; the mean
    # divides by the true T, not the padded length).
    x_p = x if t_pad == T else jnp.pad(x, ((0, 0), (0, 0), (0, t_pad - T)))

    # Pass 1: per-(b, c) gate of shape (B, C, 1), C on the sublane axis.
    gate = pl.pallas_call(
        functools.partial(_se_squeeze_excite_kernel, inv_t=inv_t),
        out_shape=jax.ShapeDtypeStruct((B, C, 1), jnp.float32),
        grid=(B, n_t),
        in_specs=[pl.BlockSpec((1, C, tile_t), lambda b, t: (b, 0, t))]
                 + weight_specs,
        out_specs=pl.BlockSpec((1, C, 1), lambda b, t: (b, 0, 0)),
        scratch_shapes=[pltpu.VMEM((C, 1), jnp.float32)],
        compiler_params=pltpu.CompilerParams(
            dimension_semantics=("parallel", "arbitrary"),
            vmem_limit_bytes=_VMEM_LIMIT_BYTES),
        cost_estimate=pl.CostEstimate(
            flops=int(B * (C * t_pad + 4 * C * H)),
            transcendentals=int(B * C),
            bytes_accessed=int(B * C * t_pad * itemsize + params_bytes)),
    )(x_p, w1f, b1c, w2f, b2c)

    # Pass 2: stream x again and scale (fully parallel, HBM-roofline bound).
    out = pl.pallas_call(
        _se_scale_kernel,
        out_shape=jax.ShapeDtypeStruct((B, C, t_pad), x.dtype),
        grid=(B, n_t),
        in_specs=[
            pl.BlockSpec((1, C, tile_t), lambda b, t: (b, 0, t)),
            pl.BlockSpec((1, C, 1), lambda b, t: (b, 0, 0)),
        ],
        out_specs=pl.BlockSpec((1, C, tile_t), lambda b, t: (b, 0, t)),
        compiler_params=pltpu.CompilerParams(
            dimension_semantics=("parallel", "parallel"),
            vmem_limit_bytes=_VMEM_LIMIT_BYTES),
        cost_estimate=pl.CostEstimate(
            flops=int(B * C * t_pad),
            transcendentals=0,
            bytes_accessed=int(2 * B * C * t_pad * itemsize + B * C * 4)),
    )(x_p, gate)

    return out if t_pad == T else out[:, :, :T]


def se_connect_ref(x, w1, b1, w2, b2):
    """Pure-JAX reference mirroring the PyTorch forward."""
    m = x.mean(axis=2)
    h = jax.nn.relu(m @ w1.T + b1)
    g = jax.nn.sigmoid(h @ w2.T + b2)
    return x * g[:, :, None]


if __name__ == "__main__":
    key = jax.random.PRNGKey(0)
    k_x, k_w1, k_b1, k_w2, k_b2, k_x2 = jax.random.split(key, 6)
    s = 2

    # --- Test 1: small shape -> fused single-pass path. ---------------------
    B, C, T = 2, 4, 16
    H = C // s
    x = jax.random.normal(k_x, (B, C, T), dtype=jnp.float32)
    w1 = jax.random.normal(k_w1, (H, C), dtype=jnp.float32) * 0.5
    b1 = jax.random.normal(k_b1, (H,), dtype=jnp.float32) * 0.1
    w2 = jax.random.normal(k_w2, (C, H), dtype=jnp.float32) * 0.5
    b2 = jax.random.normal(k_b2, (C,), dtype=jnp.float32) * 0.1

    out = jax.block_until_ready(se_connect(x, w1, b1, w2, b2))
    ref = se_connect_ref(x, w1, b1, w2, b2)
    assert out.shape == (B, C, T)
    assert jnp.allclose(out, ref, atol=1e-5, rtol=1e-5), "fused path mismatch"

    # --- Test 2: tiny block budget + ragged T -> two-pass T-tiled path. -----
    B2, C2, T2 = 2, 8, 200
    H2 = C2 // s
    x2 = jax.random.normal(k_x2, (B2, C2, T2), dtype=jnp.float32)
    w1b = jax.random.normal(k_w1, (H2, C2), dtype=jnp.float32) * 0.5
    b1b = jax.random.normal(k_b1, (H2,), dtype=jnp.float32) * 0.1
    w2b = jax.random.normal(k_w2, (C2, H2), dtype=jnp.float32) * 0.5
    b2b = jax.random.normal(k_b2, (C2,), dtype=jnp.float32) * 0.1

    out2 = jax.block_until_ready(
        se_connect(x2, w1b, b1b, w2b, b2b, max_block_bytes=1024))
    ref2 = se_connect_ref(x2, w1b, b1b, w2b, b2b)
    assert out2.shape == (B2, C2, T2)
    assert jnp.allclose(out2, ref2, atol=1e-5, rtol=1e-5), "two-pass mismatch"

    print("KERNEL_OK")
</pallas_src>

<mosaic_0001>
module attributes {stable_mosaic.version = 11 : i64} {
  func.func @_se_fused_kernel(%arg0: i32, %arg1: memref<1x4x16xf32, #tpu.memory_space<vmem>>, %arg2: memref<2x4xf32, #tpu.memory_space<vmem>>, %arg3: memref<2x1xf32, #tpu.memory_space<vmem>>, %arg4: memref<4x2xf32, #tpu.memory_space<vmem>>, %arg5: memref<4x1xf32, #tpu.memory_space<vmem>>, %arg6: memref<1x4x16xf32, #tpu.memory_space<vmem>>) attributes {dimension_semantics = [#tpu.dimension_semantics<parallel>], iteration_bounds = array<i64: 2>, scalar_prefetch = 0 : i64, scratch_operands = 0 : i64, tpu.core_type = #tpu.core_type<tc>, window_params = [{transform_indices = @transform_0, window_bounds = array<i64: 1, 4, 16>}, {pipeline_mode = #tpu.pipeline_mode<synchronous>, transform_indices = @transform_1, window_bounds = array<i64: 2, 4>}, {pipeline_mode = #tpu.pipeline_mode<synchronous>, transform_indices = @transform_2, window_bounds = array<i64: 2, 1>}, {pipeline_mode = #tpu.pipeline_mode<synchronous>, transform_indices = @transform_3, window_bounds = array<i64: 4, 2>}, {pipeline_mode = #tpu.pipeline_mode<synchronous>, transform_indices = @transform_4, window_bounds = array<i64: 4, 1>}, {transform_indices = @transform_5, window_bounds = array<i64: 1, 4, 16>}]} {
    %c0 = arith.constant 0 : index
    %c0_0 = arith.constant 0 : index
    %c0_1 = arith.constant 0 : index
    %0 = vector.load %arg1[%c0, %c0_0, %c0_1] : memref<1x4x16xf32, #tpu.memory_space<vmem>>, vector<1x4x16xf32>
    %1 = vector.shape_cast %0 : vector<1x4x16xf32> to vector<4x16xf32>
    %cst = arith.constant dense<0.000000e+00> : vector<4xf32>
    %2 = vector.multi_reduction <add>, %1, %cst [1] : vector<4x16xf32> to vector<4xf32>
    %3 = vector.shape_cast %2 : vector<4xf32> to vector<4x1xf32>
    %cst_2 = arith.constant 6.250000e-02 : f32
    %4 = vector.broadcast %cst_2 : f32 to vector<4x1xf32>
    %5 = arith.mulf %3, %4 : vector<4x1xf32>
    %c0_3 = arith.constant 0 : index
    %c0_4 = arith.constant 0 : index
    %6 = vector.load %arg2[%c0_3, %c0_4] : memref<2x4xf32, #tpu.memory_space<vmem>>, vector<2x4xf32>
    %cst_5 = arith.constant dense<0.000000e+00> : vector<2x1xf32>
    %7 = tpu.matmul %6, %5, %cst_5 {dimension_numbers = #tpu.dot_dimension_numbers<[1], [0], [0], [1], [0, 0, 1, 1], [], []>} : vector<2x4xf32>, vector<4x1xf32>, vector<2x1xf32> -> vector<2x1xf32>
    %c0_6 = arith.constant 0 : index
    %c0_7 = arith.constant 0 : index
    %8 = vector.load %arg3[%c0_6, %c0_7] : memref<2x1xf32, #tpu.memory_space<vmem>>, vector<2x1xf32>
    %9 = arith.addf %7, %8 : vector<2x1xf32>
    %cst_8 = arith.constant 0.000000e+00 : f32
    %10 = vector.broadcast %cst_8 : f32 to vector<2x1xf32>
    %11 = arith.maximumf %9, %10 : vector<2x1xf32>
    %c0_9 = arith.constant 0 : index
    %c0_10 = arith.constant 0 : index
    %12 = vector.load %arg4[%c0_9, %c0_10] : memref<4x2xf32, #tpu.memory_space<vmem>>, vector<4x2xf32>
    %cst_11 = arith.constant dense<0.000000e+00> : vector<4x1xf32>
    %13 = tpu.matmul %12, %11, %cst_11 {dimension_numbers = #tpu.dot_dimension_numbers<[1], [0], [0], [1], [0, 0, 1, 1], [], []>} : vector<4x2xf32>, vector<2x1xf32>, vector<4x1xf32> -> vector<4x1xf32>
    %c0_12 = arith.constant 0 : index
    %c0_13 = arith.constant 0 : index
    %14 = vector.load %arg5[%c0_12, %c0_13] : memref<4x1xf32, #tpu.memory_space<vmem>>, vector<4x1xf32>
    %15 = arith.addf %13, %14 : vector<4x1xf32>
    %16 = arith.negf %15 : vector<4x1xf32>
    %17 = math.exp %16 : vector<4x1xf32>
    %cst_14 = arith.constant 1.000000e+00 : f32
    %18 = vector.broadcast %cst_14 : f32 to vector<4x1xf32>
    %19 = arith.addf %18, %17 : vector<4x1xf32>
    %20 = arith.divf %18, %19 : vector<4x1xf32>
    %21 = vector.broadcast %20 : vector<4x1xf32> to vector<4x16xf32>
    %22 = arith.mulf %1, %21 : vector<4x16xf32>
    %23 = vector.shape_cast %22 : vector<4x16xf32> to vector<1x4x16xf32>
    %c0_15 = arith.constant 0 : index
    %c0_16 = arith.constant 0 : index
    %c0_17 = arith.constant 0 : index
    %24 = vector.load %arg6[%c0_15, %c0_16, %c0_17] : memref<1x4x16xf32, #tpu.memory_space<vmem>>, vector<1x4x16xf32>
    tpu.vector_store %arg6[%c0_15, %c0_16, %c0_17], %23 {strides = array<i32>} : memref<1x4x16xf32, #tpu.memory_space<vmem>>, vector<1x4x16xf32>,
    return
  }
  func.func @transform_0(%arg0: i32) -> (i32, i32, i32) {
    %c0_i32 = arith.constant 0 : i32
    %c0_i32_0 = arith.constant 0 : i32
    %c0_i32_1 = arith.constant 0 : i32
    return %arg0, %c0_i32, %c0_i32_0 : i32, i32, i32
  }
  func.func @transform_1(%arg0: i32) -> (i32, i32) {
    %c0_i32 = arith.constant 0 : i32
    %c0_i32_0 = arith.constant 0 : i32
    %c0_i32_1 = arith.constant 0 : i32
    return %c0_i32, %c0_i32_0 : i32, i32
  }
  func.func @transform_2(%arg0: i32) -> (i32, i32) {
    %c0_i32 = arith.constant 0 : i32
    %c0_i32_0 = arith.constant 0 : i32
    %c0_i32_1 = arith.constant 0 : i32
    return %c0_i32, %c0_i32_0 : i32, i32
  }
  func.func @transform_3(%arg0: i32) -> (i32, i32) {
    %c0_i32 = arith.constant 0 : i32
    %c0_i32_0 = arith.constant 0 : i32
    %c0_i32_1 = arith.constant 0 : i32
    return %c0_i32, %c0_i32_0 : i32, i32
  }
  func.func @transform_4(%arg0: i32) -> (i32, i32) {
    %c0_i32 = arith.constant 0 : i32
    %c0_i32_0 = arith.constant 0 : i32
    %c0_i32_1 = arith.constant 0 : i32
    return %c0_i32, %c0_i32_0 : i32, i32
  }
  func.func @transform_5(%arg0: i32) -> (i32, i32, i32) {
    %c0_i32 = arith.constant 0 : i32
    %c0_i32_0 = arith.constant 0 : i32
    %c0_i32_1 = arith.constant 0 : i32
    return %arg0, %c0_i32, %c0_i32_0 : i32, i32, i32
  }
}

</mosaic_0001>

<llo_original>
// kernel: tpu_custom_call.1
$region0: #{tpu_custom_call.1}
  #allocation0 [shape = 'u32[]', space=smem, size = 0x4, offset = 0x4, fixed_abs, tag = 'smem constant byte address 0x4 - core index']
  #allocation1 [shape = 'u32[144,128]{1,0:T(1,128)}', space=vmem, size = 0x12000, scoped, tag = 'internal scratch']
  %s0 = inlined_call_operand.vmem [shape: f32[2,4,16], index: 0, kind: input, shape index: {}]
  %s1 = inlined_call_operand.vmem [shape: f32[2,4], index: 1, kind: input, shape index: {}]
  %s2 = inlined_call_operand.vmem [shape: f32[2,1], index: 2, kind: input, shape index: {}]
  %s3 = inlined_call_operand.vmem [shape: f32[4,2], index: 3, kind: input, shape index: {}]
  %s4 = inlined_call_operand.vmem [shape: f32[4,1], index: 4, kind: input, shape index: {}]
  %s5 = inlined_call_operand.hbm [shape: f32[2,4,16], index: 5, kind: output, shape index: {}]
  %s6 = sld [smem:[#allocation0]]
  $region53: #{tpu_custom_call.1} parent=0
    _
  %s8 = ssub.s32 1, %s6
  %s9 = scalar_select 0, %s8, %s6
  $region1: #{tpu_custom_call.1} parent=0
    #allocation2 [shape = 'u8[4096]{0}', space=vmem, size = 0x1000, scoped, tag = 'output window, operand 0']
    #allocation3 [shape = 's32[2]{0}', space=sflag, size = 0x8, scoped, tag = 'scoped memory for tpu_custom_call.1']
    %10 = vsyncpa [#allocation3], 0
    %s11 = scalar_lea.sflag [#allocation3], 1
    %12 = vsyncpa %s11, 0
    loop: start=0, step=1, limit=4
    $region2: #{tpu_custom_call.1} parent=1 // loop_pre_header
      _
    $region3: #{tpu_custom_call.1} parent=1 // loop_header
      %s14 = sphi 0, %s18
      %p15 = scmp.ge.s32.totalorder %s14, 4
      %s24 = sphi 0, %s26
      %s27 = sphi 0, %s24
      %s28 = sphi 0, %s27
      %s44 = sphi 0, %s28
      %s48 = sphi 0, %s48
      %s50 = sphi 0, %s48
      %s51 = sphi 0, %s50
      %s65 = sphi 0, %s51
      %s69 = sphi 0, %s69
      %s71 = sphi 0, %s69
      %s72 = sphi 0, %s71
      %s86 = sphi 0, %s72
      %s90 = sphi 0, %s90
      %s92 = sphi 0, %s90
      %s93 = sphi 0, %s92
      %s107 = sphi 0, %s93
      %s111 = sphi 0, %s111
      %s113 = sphi 0, %s111
      %s114 = sphi 0, %s113
      %s128 = sphi 0, %s114
      %s134 = sphi 0, %s136
      %s137 = sphi 0, %s134
      %s138 = sphi 0, %s137
      %s154 = sphi 0, %s138
    $region4: #{tpu_custom_call.1} parent=1 // loop_header_branch
      %17 = sbr.rel (%p15) target = $region8
    $region5: #{tpu_custom_call.1} parent=1 // loop_body
      %s19 = ssub.s32 %s14, 1
      %s20 = ssub.s32 %s14, 2
      %s21 = sadd.s32 %s14, 1
      %s22 = ssub.s32 %s14, %s21
      %p23 = scmp.eq.s32.totalorder %s22, 0
      %s25 = sadd.s32 %s24, 1
      %s26 = scalar_select %p23, %s24, %s25
      %p29 = pneg %p23
      %p30 = scmp.eq.s32.totalorder %s14, 1
      %p31 = por %p29, %p30
      %p32 = scmp.ne.s32.totalorder %s24, %s27
      %p33 = scmp.eq.s32.totalorder %s14, 0
      %p34 = por %p32, %p33
      %p35 = scmp.ne.s32.totalorder %s24, %s27
      %p36 = scmp.eq.s32.totalorder %s19, 1
      %p37 = por %p35, %p36
      %p38 = scmp.ne.s32.totalorder %s27, %s28
      %p39 = scmp.eq.s32.totalorder %s19, 0
      %p40 = por %p38, %p39
      %p41 = scmp.ne.s32.totalorder %s27, %s28
      %p42 = scmp.eq.s32.totalorder %s20, 1
      %p43 = por %p41, %p42
      %p45 = scmp.ne.s32.totalorder %s28, %s44
      %p46 = scmp.eq.s32.totalorder %s20, 0
      %p47 = por %p45, %p46
      %s49 = sadd.s32 %s48, 1
      %p52 = scmp.eq.s32.totalorder %s14, 1
      %p53 = scmp.ne.s32.totalorder %s48, %s50
      %p54 = scmp.eq.s32.totalorder %s14, 0
      %p55 = por %p53, %p54
      %p56 = scmp.ne.s32.totalorder %s48, %s50
      %p57 = scmp.eq.s32.totalorder %s19, 1
      %p58 = por %p56, %p57
      %p59 = scmp.ne.s32.totalorder %s50, %s51
      %p60 = scmp.eq.s32.totalorder %s19, 0
      %p61 = por %p59, %p60
      %p62 = scmp.ne.s32.totalorder %s50, %s51
      %p63 = scmp.eq.s32.totalorder %s20, 1
      %p64 = por %p62, %p63
      %p66 = scmp.ne.s32.totalorder %s51, %s65
      %p67 = scmp.eq.s32.totalorder %s20, 0
      %p68 = por %p66, %p67
      %s70 = sadd.s32 %s69, 1
      %p73 = scmp.eq.s32.totalorder %s14, 1
      %p74 = scmp.ne.s32.totalorder %s69, %s71
      %p75 = scmp.eq.s32.totalorder %s14, 0
      %p76 = por %p74, %p75
      %p77 = scmp.ne.s32.totalorder %s69, %s71
      %p78 = scmp.eq.s32.totalorder %s19, 1
      %p79 = por %p77, %p78
      %p80 = scmp.ne.s32.totalorder %s71, %s72
      %p81 = scmp.eq.s32.totalorder %s19, 0
      %p82 = por %p80, %p81
      %p83 = scmp.ne.s32.totalorder %s71, %s72
      %p84 = scmp.eq.s32.totalorder %s20, 1
      %p85 = por %p83, %p84
      %p87 = scmp.ne.s32.totalorder %s72, %s86
      %p88 = scmp.eq.s32.totalorder %s20, 0
      %p89 = por %p87, %p88
      %s91 = sadd.s32 %s90, 1
      %p94 = scmp.eq.s32.totalorder %s14, 1
      %p95 = scmp.ne.s32.totalorder %s90, %s92
      %p96 = scmp.eq.s32.totalorder %s14, 0
      %p97 = por %p95, %p96
      %p98 = scmp.ne.s32.totalorder %s90, %s92
      %p99 = scmp.eq.s32.totalorder %s19, 1
      %p100 = por %p98, %p99
      %p101 = scmp.ne.s32.totalorder %s92, %s93
      %p102 = scmp.eq.s32.totalorder %s19, 0
      %p103 = por %p101, %p102
      %p104 = scmp.ne.s32.totalorder %s92, %s93
      %p105 = scmp.eq.s32.totalorder %s20, 1
      %p106 = por %p104, %p105
      %p108 = scmp.ne.s32.totalorder %s93, %s107
      %p109 = scmp.eq.s32.totalorder %s20, 0
      %p110 = por %p108, %p109
      %s112 = sadd.s32 %s111, 1
      %p115 = scmp.eq.s32.totalorder %s14, 1
      %p116 = scmp.ne.s32.totalorder %s111, %s113
      %p117 = scmp.eq.s32.totalorder %s14, 0
      %p118 = por %p116, %p117
      %p119 = scmp.ne.s32.totalorder %s111, %s113
      %p120 = scmp.eq.s32.totalorder %s19, 1
      %p121 = por %p119, %p120
      %p122 = scmp.ne.s32.totalorder %s113, %s114
      %p123 = scmp.eq.s32.totalorder %s19, 0
      %p124 = por %p122, %p123
      %p125 = scmp.ne.s32.totalorder %s113, %s114
      %p126 = scmp.eq.s32.totalorder %s20, 1
      %p127 = por %p125, %p126
      %p129 = scmp.ne.s32.totalorder %s114, %s128
      %p130 = scmp.eq.s32.totalorder %s20, 0
      %p131 = por %p129, %p130
      %s132 = ssub.s32 %s14, %s21
      %p133 = scmp.eq.s32.totalorder %s132, 0
      %s135 = sadd.s32 %s134, 1
      %s136 = scalar_select %p133, %s134, %s135
      %p139 = pneg %p133
      %p140 = scmp.eq.s32.totalorder %s14, 1
      %p141 = por %p139, %p140
      %p142 = scmp.ne.s32.totalorder %s134, %s137
      %p143 = scmp.eq.s32.totalorder %s14, 0
      %p144 = por %p142, %p143
      %p145 = scmp.ne.s32.totalorder %s134, %s137
      %p146 = scmp.eq.s32.totalorder %s19, 1
      %p147 = por %p145, %p146
      %p148 = scmp.ne.s32.totalorder %s137, %s138
      %p149 = scmp.eq.s32.totalorder %s19, 0
      %p150 = por %p148, %p149
      %p151 = scmp.ne.s32.totalorder %s137, %s138
      %p152 = scmp.eq.s32.totalorder %s20, 1
      %p153 = por %p151, %p152
      %p155 = scmp.ne.s32.totalorder %s138, %s154
      %p156 = scmp.eq.s32.totalorder %s20, 0
      %p157 = por %p155, %p156
      %p158 = scmp.le.s32.totalorder 1, %s14
      %p159 = scmp.lt.s32.totalorder %s14, 3
      %p160 = pnand %p158, %p159
      %p161 = pneg %p160
      // Predicated region
      $region9: #{tpu_custom_call.1} parent=5 // pred_check
        _
      $region10: #{tpu_custom_call.1} parent=5 // pred_check_branch
        %163 = sbr.rel (%p160) target = $region12
      $region11: #{tpu_custom_call.1} parent=5 // pred_region
        %s164 = ssub.s32 %s14, 1
        // Predicated region
        $region13: #{tpu_custom_call.1} parent=11 // pred_check
          %p165 = pneg %p61
        $region14: #{tpu_custom_call.1} parent=11 // pred_check_branch
          %167 = sbr.rel (%p165) target = $region16
        $region15: #{tpu_custom_call.1} parent=11 // pred_region
          _
        $region16: #{tpu_custom_call.1} parent=11 // pred_fallthru
          _
        // Predicated region
        $region17: #{tpu_custom_call.1} parent=11 // pred_check
          %p168 = pneg %p82
        $region18: #{tpu_custom_call.1} parent=11 // pred_check_branch
          %170 = sbr.rel (%p168) target = $region20
        $region19: #{tpu_custom_call.1} parent=11 // pred_region
          _
        $region20: #{tpu_custom_call.1} parent=11 // pred_fallthru
          _
        // Predicated region
        $region21: #{tpu_custom_call.1} parent=11 // pred_check
          %p171 = pneg %p103
        $region22: #{tpu_custom_call.1} parent=11 // pred_check_branch
          %173 = sbr.rel (%p171) target = $region24
        $region23: #{tpu_custom_call.1} parent=11 // pred_region
          _
        $region24: #{tpu_custom_call.1} parent=11 // pred_fallthru
          _
        // Predicated region
        $region25: #{tpu_custom_call.1} parent=11 // pred_check
          %p174 = pneg %p124
        $region26: #{tpu_custom_call.1} parent=11 // pred_check_branch
          %176 = sbr.rel (%p174) target = $region28
        $region27: #{tpu_custom_call.1} parent=11 // pred_region
          _
        $region28: #{tpu_custom_call.1} parent=11 // pred_fallthru
          _
      $region12: #{tpu_custom_call.1} parent=5 // pred_fallthru
        _
      %p177 = scmp.lt.s32.totalorder %s14, 2
      // Predicated region
      $region29: #{tpu_custom_call.1} parent=5 // pred_check
        %p178 = pneg %p177
      $region30: #{tpu_custom_call.1} parent=5 // pred_check_branch
        %180 = sbr.rel (%p178) target = $region32
      $region31: #{tpu_custom_call.1} parent=5 // pred_region
        // Predicated region
        $region33: #{tpu_custom_call.1} parent=31 // pred_check
          %p181 = pneg %p34
        $region34: #{tpu_custom_call.1} parent=31 // pred_check_branch
          %183 = sbr.rel (%p181) target = $region36
        $region35: #{tpu_custom_call.1} parent=31 // pred_region
          %p184 = scmp.lt.s32.totalorder %s14, 1
          %s185 = scalar_select %p184, %s14, 1
          %s186 = smul.addr %s185, 4
          %s187 = scalar_lea.vmem %s0, %s186
        $region36: #{tpu_custom_call.1} parent=31 // pred_fallthru
          _
      $region32: #{tpu_custom_call.1} parent=5 // pred_fallthru
        _
      %p188 = scmp.le.s32.totalorder 1, %s14
      %p189 = scmp.lt.s32.totalorder %s14, 3
      %p190 = pnand %p188, %p189
      %p191 = pneg %p190
      // Predicated region
      $region37: #{tpu_custom_call.1} parent=5 // pred_check
        _
      $region38: #{tpu_custom_call.1} parent=5 // pred_check_branch
        %193 = sbr.rel (%p190) target = $region40
      $region39: #{tpu_custom_call.1} parent=5 // pred_region
        %s194 = ssub.s32 %s14, 1
        %p195 = scmp.lt.s32.totalorder %s19, 1
        %s196 = scalar_select %p195, %s19, 1
        %s197 = smul.addr %s196, 4
        %s198 = scalar_lea.vmem %s0, %s197
        %p199 = pneg %p40
        %p200 = pneg %p37
        %p201 = pneg %p61
        %p202 = pneg %p58
        %p203 = pneg %p82
        %p204 = pneg %p79
        %p205 = pneg %p103
        %p206 = pneg %p100
        %p207 = pneg %p124
        %p208 = pneg %p121
        %p209 = pneg %p150
        %p210 = pneg %p147
        %s211 = sand.u32 %s137, 1
        %s212 = scalar_lea.sflag [#allocation3], %s211
        %s213 = sand.u32 %s137, 1
        %s214 = smul.addr %s213, 4
        %s215 = scalar_lea.vmem [#allocation2], %s214
        %p216 = scmp.lt.s32.totalorder %s19, 1
        %s217 = scalar_select %p216, %s19, 1
        %s218 = smul.addr %s217, 4
        %s219 = scalar_lea.vmem %s0, %s218
        %v220 = vld [vmem:[%s219] sm:$0xf]
        %vm221 = vcmask 125952
        %v222 = vsel %vm221, %v220, 0.0
        %223 = vadd.xlane.f32.xlu0 %v222
        %v224 = vpop.xlane.xlu0 %223
        %v225 = vmul.f32 %v224, 0.0625
        %v226 = vld [vmem:[%s1] sm:$0x3]
        %v227 = vld [vmem:[%s2] sm:$0x3]
        %vm228 = vcmask 31744
        %v230 = vsel %vm228, %v226, 0
        %vm232 = vcmask 1043456
        %v234 = vsel %vm232, %v225, 0
        %236 = vmatprep.subr.mxu0 0.0
        %237 = vmatpush1.msra.mxu0 %v234
        %238 = vmatprep.subr.mxu0 0.0
        %239 = vmatpush1.msra.mxu0 0.0
        %240 = vmatprep.subr.mxu0 0.0
        %241 = vmatpush1.msra.mxu0 0.0
        %242 = vmatprep.subr.mxu0 0.0
        %243 = vmatpush1.msra.mxu0 0.0
        %244 = vmatprep.subr.mxu0 0.0
        %245 = vmatpush1.msra.mxu0 0.0
        %246 = vmatprep.subr.mxu0 0.0
        %247 = vmatpush1.msra.mxu0 0.0
        %248 = vmatprep.subr.mxu0 0.0
        %249 = vmatpush1.msra.mxu0 0.0
        %250 = vmatprep.subr.mxu0 0.0
        %251 = vmatpush1.msra.mxu0 0.0
        %252 = vmatprep.subr.mxu0 0.0
        %253 = vmatpush1.msra.mxu0 0.0
        %254 = vmatprep.subr.mxu0 0.0
        %255 = vmatpush1.msra.mxu0 0.0
        %256 = vmatprep.subr.mxu0 0.0
        %257 = vmatpush1.msra.mxu0 0.0
        %258 = vmatprep.subr.mxu0 0.0
        %259 = vmatpush1.msra.mxu0 0.0
        %260 = vmatprep.subr.mxu0 0.0
        %261 = vmatpush1.msra.mxu0 0.0
        %262 = vmatprep.subr.mxu0 0.0
        %263 = vmatpush1.msra.mxu0 0.0
        %264 = vmatprep.subr.mxu0 0.0
        %265 = vmatpush1.msra.mxu0 0.0
        %266 = vmatprep.subr.mxu0 0.0
        %267 = vmatpush1.msra.mxu0 0.0
        %268 = vmatprep.subr.mxu0 0.0
        %269 = vmatpush1.msra.mxu0 0.0
        %270 = vmatprep.subr.mxu0 0.0
        %271 = vmatpush1.msra.mxu0 0.0
        %272 = vmatprep.subr.mxu0 0.0
        %273 = vmatpush1.msra.mxu0 0.0
        %274 = vmatprep.subr.mxu0 0.0
        %275 = vmatpush1.msra.mxu0 0.0
        %276 = vmatprep.subr.mxu0 0.0
        %277 = vmatpush1.msra.mxu0 0.0
        %278 = vmatprep.subr.mxu0 0.0
        %279 = vmatpush1.msra.mxu0 0.0
        %280 = vmatprep.subr.mxu0 0.0
        %281 = vmatpush1.msra.mxu0 0.0
        %282 = vmatprep.subr.mxu0 0.0
        %283 = vmatpush1.msra.mxu0 0.0
        %284 = vmatprep.subr.mxu0 0.0
        %285 = vmatpush1.msra.mxu0 0.0
        %286 = vmatprep.subr.mxu0 0.0
        %287 = vmatpush1.msra.mxu0 0.0
        %288 = vmatprep.subr.mxu0 0.0
        %289 = vmatpush1.msra.mxu0 0.0
        %290 = vmatprep.subr.mxu0 0.0
        %291 = vmatpush1.msra.mxu0 0.0
        %292 = vmatprep.subr.mxu0 0.0
        %293 = vmatpush1.msra.mxu0 0.0
        %294 = vmatprep.subr.mxu0 0.0
        %295 = vmatpush1.msra.mxu0 0.0
        %296 = vmatprep.subr.mxu0 0.0
        %297 = vmatpush1.msra.mxu0 0.0
        %298 = vmatprep.subr.mxu0 0.0
        %299 = vmatpush1.msra.mxu0 0.0
        %300 = vmatprep.mubr.f32.mxu0 0.0
        %301 = vmatmul.mubr.f32.gmra.mrb[0].mxu0 %v230
        %v302 = vpop.f32.mrb[0].mxu0
        %v303 = vadd.f32 %v227, %v302
        %v304 = vpop.f32.mrb[0].mxu0
        %305 = vdwg.mxu0
        %v306 = vmax.f32 %v303, 0.0
        %v307 = vld [vmem:[%s3] sm:$0xf]
        %v308 = vld [vmem:[%s4] sm:$0xf]
        %vm309 = vcmask 15360
        %v311 = vsel %vm309, %v307, 0
        %vm313 = vcmask 1041408
        %v315 = vsel %vm313, %v306, 0
        %317 = vmatprep.subr.mxu0 0.0
        %318 = vmatpush1.msra.mxu0 %v315
        %319 = vmatprep.subr.mxu0 0.0
        %320 = vmatpush1.msra.mxu0 0.0
        %321 = vmatprep.subr.mxu0 0.0
        %322 = vmatpush1.msra.mxu0 0.0
        %323 = vmatprep.subr.mxu0 0.0
        %324 = vmatpush1.msra.mxu0 0.0
        %325 = vmatprep.subr.mxu0 0.0
        %326 = vmatpush1.msra.mxu0 0.0
        %327 = vmatprep.subr.mxu0 0.0
        %328 = vmatpush1.msra.mxu0 0.0
        %329 = vmatprep.subr.mxu0 0.0
        %330 = vmatpush1.msra.mxu0 0.0
        %331 = vmatprep.subr.mxu0 0.0
        %332 = vmatpush1.msra.mxu0 0.0
        %333 = vmatprep.subr.mxu0 0.0
        %334 = vmatpush1.msra.mxu0 0.0
        %335 = vmatprep.subr.mxu0 0.0
        %336 = vmatpush1.msra.mxu0 0.0
        %337 = vmatprep.subr.mxu0 0.0
        %338 = vmatpush1.msra.mxu0 0.0
        %339 = vmatprep.subr.mxu0 0.0
        %340 = vmatpush1.msra.mxu0 0.0
        %341 = vmatprep.subr.mxu0 0.0
        %342 = vmatpush1.msra.mxu0 0.0
        %343 = vmatprep.subr.mxu0 0.0
        %344 = vmatpush1.msra.mxu0 0.0
        %345 = vmatprep.subr.mxu0 0.0
        %346 = vmatpush1.msra.mxu0 0.0
        %347 = vmatprep.subr.mxu0 0.0
        %348 = vmatpush1.msra.mxu0 0.0
        %349 = vmatprep.subr.mxu0 0.0
        %350 = vmatpush1.msra.mxu0 0.0
        %351 = vmatprep.subr.mxu0 0.0
        %352 = vmatpush1.msra.mxu0 0.0
        %353 = vmatprep.subr.mxu0 0.0
        %354 = vmatpush1.msra.mxu0 0.0
        %355 = vmatprep.subr.mxu0 0.0
        %356 = vmatpush1.msra.mxu0 0.0
        %357 = vmatprep.subr.mxu0 0.0
        %358 = vmatpush1.msra.mxu0 0.0
        %359 = vmatprep.subr.mxu0 0.0
        %360 = vmatpush1.msra.mxu0 0.0
        %361 = vmatprep.subr.mxu0 0.0
        %362 = vmatpush1.msra.mxu0 0.0
        %363 = vmatprep.subr.mxu0 0.0
        %364 = vmatpush1.msra.mxu0 0.0
        %365 = vmatprep.subr.mxu0 0.0
        %366 = vmatpush1.msra.mxu0 0.0
        %367 = vmatprep.subr.mxu0 0.0
        %368 = vmatpush1.msra.mxu0 0.0
        %369 = vmatprep.subr.mxu0 0.0
        %370 = vmatpush1.msra.mxu0 0.0
        %371 = vmatprep.subr.mxu0 0.0
        %372 = vmatpush1.msra.mxu0 0.0
        %373 = vmatprep.subr.mxu0 0.0
        %374 = vmatpush1.msra.mxu0 0.0
        %375 = vmatprep.subr.mxu0 0.0
        %376 = vmatpush1.msra.mxu0 0.0
        %377 = vmatprep.subr.mxu0 0.0
        %378 = vmatpush1.msra.mxu0 0.0
        %379 = vmatprep.subr.mxu0 0.0
        %380 = vmatpush1.msra.mxu0 0.0
        %381 = vmatprep.mubr.f32.mxu0 0.0
        %382 = vmatmul.mubr.f32.gmra.mrb[0].mxu0 %v311
        %v383 = vpop.f32.mrb[0].mxu0
        %v384 = vadd.f32 %v308, %v383
        %v385 = vpop.f32.mrb[0].mxu0
        %386 = vdwg.mxu0
        %v387 = vxor.u32 %v384, 2147483648
        %v388 = vmul.f32 %v387, 1.442695
        %v389 = vpow.pop %v388
        %v390 = vadd.f32 %v389, 1.0
        %v391 = vrcp.pop %v390
        %v392 = vmul.f32 1.0, %v391
        %394 = vset.pattern.permute.xlu0 0
        %395 = vperm.xlu0 %394, %v392
        %v396 = vpop.permute.xlu0 %395
        %v398 = vmul.f32 %v220, %v396
        %399 = vst.msk [vmem:[%s215] sm:$0xf] %vm221, %v398
        %s400 = sand.u32 %s137, 1
        %s401 = scalar_lea.sflag [#allocation3], %s400
        %s402 = sand.u32 %s137, 1
        %s403 = smul.addr %s402, 4
        %s404 = scalar_lea.vmem [#allocation2], %s403
        // Predicated region
        $region41: #{tpu_custom_call.1} parent=39 // pred_check
          %p405 = pneg %p147
        $region42: #{tpu_custom_call.1} parent=39 // pred_check_branch
          %407 = sbr.rel (%p405) target = $region44
        $region43: #{tpu_custom_call.1} parent=39 // pred_region
          %s409 = ssub.s32 64, 64
          %410 = vsyncadd %s401, %s409
          %s411 = smul.addr %s19, 64
          %s412 = scalar_lea.hbm %s5, %s411
          %s414 = sshll.u32 %s404, 4
          %s415 = int_to_ptr.vmem [resolvable:$true] %s414
          %417 = dma.vmem_to_hbm [thread:$0]  %s415, 64, %s412, %s401
        $region44: #{tpu_custom_call.1} parent=39 // pred_fallthru
          _
      $region40: #{tpu_custom_call.1} parent=5 // pred_fallthru
        _
      %p418 = scmp.le.s32.totalorder 2, %s14
      // Predicated region
      $region45: #{tpu_custom_call.1} parent=5 // pred_check
        %p419 = pneg %p418
      $region46: #{tpu_custom_call.1} parent=5 // pred_check_branch
        %421 = sbr.rel (%p419) target = $region48
      $region47: #{tpu_custom_call.1} parent=5 // pred_region
        %s422 = ssub.s32 %s14, 2
        // Predicated region
        $region49: #{tpu_custom_call.1} parent=47 // pred_check
          %p423 = pneg %p153
        $region50: #{tpu_custom_call.1} parent=47 // pred_check_branch
          %425 = sbr.rel (%p423) target = $region52
        $region51: #{tpu_custom_call.1} parent=47 // pred_region
          %s426 = sand.u32 %s138, 1
          %s427 = scalar_lea.sflag [#allocation3], %s426
          %s428 = sand.u32 %s138, 1
          %s429 = smul.addr %s428, 4
          %s430 = scalar_lea.vmem [#allocation2], %s429
          %431 = dma.done %s427, 64
        $region52: #{tpu_custom_call.1} parent=47 // pred_fallthru
          _
      $region48: #{tpu_custom_call.1} parent=5 // pred_fallthru
        _
    $region6: #{tpu_custom_call.1} parent=1 // loop_footer
      %s18 = sadd.s32 1, %s14
    $region7: #{tpu_custom_call.1} parent=1 // loop_footer_branch
      %13 = sbr.rel target = $region3
    $region8: #{tpu_custom_call.1} parent=1 // loop_exit
      _
    %432 = vsyncpa [#allocation3], 1
    %s433 = scalar_lea.sflag [#allocation3], 1
    %434 = vsyncpa %s433, 1

</llo_original>
